<compile_context>
chip_gen: v6e
topology: v6e:2x2x1
jax: 0.10.0
libtpu: 0.0.40
codegen_flags: <defaults>
</compile_context>

<pallas_src>
import functools
import math

import jax
import jax.numpy as jnp
from jax.experimental import pallas as pl
from jax.experimental.pallas import tpu as pltpu


def _round_up(v, m):
    return (v + m - 1) // m * m


def _parametrized_logistic_kernel(x_ref, w_ref, b_ref, u_ref, o_ref, *,
                                  out_dim, mxu_bf16):
    x = x_ref[...]
    w = w_ref[...]
    if mxu_bf16:
        x = x.astype(jnp.bfloat16)
        w = w.astype(jnp.bfloat16)

    # One fused MXU matmul contracting the last dims of both operands
    # (x: (tm, in_dim), w: (2*out_dim, in_dim)) -> h: (tm, 2*out_dim), f32 acc.
    h = jax.lax.dot_general(
        x, w, (((1,), (1,)), ((), ())),
        preferred_element_type=jnp.float32,
    ) + b_ref[...]

    mu = h[:, :out_dim]
    std = h[:, out_dim:]

    # torch semantics: clamp the uniform draw to [tiny, 1 - eps] in f32, then
    # logit.  (Upper clamp kept: u comes from jax.random.uniform here, not a
    # 23-bit mantissa construction, so it is not a guaranteed no-op.)
    finfo = jnp.finfo(jnp.float32)
    u = jnp.clip(u_ref[...].astype(jnp.float32), finfo.tiny, 1.0 - finfo.eps)
    y = jnp.log(u) - jnp.log1p(-u)

    o_ref[...] = (mu + y * std).astype(o_ref.dtype)


def parametrized_logistic(x, w, b, key, *, min_std=0.001, tm=512,
                          mxu_bf16=True, out_dtype=None):
    """Forward of mimikit's ParametrizedLogistic (Linear variant).

    x:   (..., in_dim) array
    w:   (2*out_dim, in_dim)   -- PyTorch nn.Linear weight layout (unmodified)
    b:   (2*out_dim,)          -- PyTorch nn.Linear bias
    key: jax PRNG key for the logistic-noise uniform draw (torch.rand_like)
    mxu_bf16: cast x/W to bf16 for the MXU (f32 accumulation); set False for
              full f32 parity with the PyTorch reference.
    Returns (..., out_dim) in out_dtype (default: x.dtype).
    """
    del min_std  # the reference forward never reads it

    *lead, in_dim = x.shape
    two_out, in_dim_w = w.shape
    assert in_dim_w == in_dim and two_out % 2 == 0
    out_dim = two_out // 2
    if out_dtype is None:
        out_dtype = x.dtype

    n = math.prod(lead) if lead else 1

    # Row tiling: multiple of 8 (sublane), large to amortize per-step overhead,
    # and >= 2 grid steps whenever possible so both v7x TensorCores get work
    # under dimension_semantics=("parallel",).
    tm = max(8, _round_up(tm, 8))
    n8 = _round_up(n, 8)
    tm_eff = min(tm, n8)
    if n8 // tm_eff < 2 and n8 >= 16:
        tm_eff = _round_up(-(-n8 // 2), 8)
    n_pad = _round_up(n8, tm_eff)
    grid = (n_pad // tm_eff,)

    # x in its native dtype (bf16 cast happens in-kernel); pad rows only when
    # the tiling requires it.
    x2 = x.reshape(n, in_dim)
    if n_pad != n:
        x2 = jnp.pad(x2, ((0, n_pad - n), (0, 0)))

    b2 = b.reshape(1, two_out).astype(jnp.float32)

    # torch.rand_like equivalent, drawn directly at the padded row count so no
    # separate pad pass is needed for the noise stream.
    u = jax.random.uniform(key, (n_pad, out_dim), jnp.float32)

    # VMEM budget: double-buffered x / u / out row tiles + (single-fetch)
    # weight & bias + f32 temporaries.  Generation-aware cap.
    x_item = jnp.dtype(x.dtype).itemsize
    o_item = jnp.dtype(out_dtype).itemsize
    vmem_bytes = (2 * tm_eff * in_dim * x_item
                  + 2 * two_out * in_dim * jnp.dtype(w.dtype).itemsize
                  + 2 * two_out * 4
                  + 2 * tm_eff * out_dim * 4
                  + 2 * tm_eff * out_dim * o_item
                  + 6 * tm_eff * two_out * 4)
    try:
        vmem_cap = int(pltpu.get_tpu_info().vmem_capacity_bytes) * 3 // 4
    except Exception:  # no TPU visible (e.g. interpret mode): v7x-safe cap
        vmem_cap = 48 * 2**20
    vmem_limit = int(min(vmem_cap, max(32 * 2**20, 2 * vmem_bytes)))

    kernel = functools.partial(_parametrized_logistic_kernel,
                               out_dim=out_dim, mxu_bf16=mxu_bf16)

    out = pl.pallas_call(
        kernel,
        out_shape=jax.ShapeDtypeStruct((n_pad, out_dim), out_dtype),
        grid=grid,
        in_specs=[
            pl.BlockSpec((tm_eff, in_dim), lambda i: (i, 0)),    # x row tile
            pl.BlockSpec((two_out, in_dim), lambda i: (0, 0)),   # W (grid-invariant)
            pl.BlockSpec((1, two_out), lambda i: (0, 0)),        # bias (grid-invariant)
            pl.BlockSpec((tm_eff, out_dim), lambda i: (i, 0)),   # uniform noise tile
        ],
        out_specs=pl.BlockSpec((tm_eff, out_dim), lambda i: (i, 0)),
        compiler_params=pltpu.CompilerParams(
            dimension_semantics=("parallel",),
            vmem_limit_bytes=vmem_limit,
        ),
    )(x2, w, b2, u)

    if n_pad != n:
        out = out[:n]
    return out.reshape(*lead, out_dim)


if __name__ == "__main__":
    # Small shapes consistent with the module: batch=2, seq=8, in_dim=32, out_dim=16.
    B, T, IN_DIM, OUT_DIM = 2, 8, 32, 16

    root = jax.random.PRNGKey(0)
    kx, kw, kb, knoise = jax.random.split(root, 4)

    # PyTorch nn.Linear-style deterministic init.
    bound = 1.0 / math.sqrt(IN_DIM)
    w = jax.random.uniform(kw, (2 * OUT_DIM, IN_DIM), jnp.float32, -bound, bound)
    b = jax.random.uniform(kb, (2 * OUT_DIM,), jnp.float32, -bound, bound)
    x = jax.random.normal(kx, (B, T, IN_DIM), jnp.float32)

    x2d = x.reshape(B * T, IN_DIM)
    h_ref = jnp.dot(x2d, w.T, precision=jax.lax.Precision.HIGHEST) + b
    mu_ref = h_ref[:, :OUT_DIM]
    std_ref = h_ref[:, OUT_DIM:]

    # 1) Full-forward parity check (f32 MXU path).  B*T is a multiple of 8 so
    #    no row padding happens and the kernel's noise draw
    #    jax.random.uniform(knoise, (B*T, OUT_DIM)) is reproduced exactly.
    out_f32 = parametrized_logistic(x, w, b, knoise, mxu_bf16=False)
    jax.block_until_ready(out_f32)
    assert out_f32.shape == (B, T, OUT_DIM)
    assert bool(jnp.all(jnp.isfinite(out_f32)))
    finfo = jnp.finfo(jnp.float32)
    u_ref = jnp.clip(jax.random.uniform(knoise, (B * T, OUT_DIM), jnp.float32),
                     finfo.tiny, 1.0 - finfo.eps)
    y_ref = jnp.log(u_ref) - jnp.log1p(-u_ref)
    full_ref = (mu_ref + y_ref * std_ref).reshape(B, T, OUT_DIM)
    assert jnp.allclose(out_f32, full_ref, atol=2e-3, rtol=2e-3), \
        "full forward mismatch vs reference (f32 path)"

    # 2) Deterministic check of the default (bf16 MXU) path: zero the std half
    #    so the output must equal mu (host reference uses the same bf16 casts).
    w_det = w.at[OUT_DIM:].set(0.0)
    b_det = b.at[OUT_DIM:].set(0.0)
    out_det = parametrized_logistic(x, w_det, b_det, knoise)
    jax.block_until_ready(out_det)
    mu_bf16 = (jnp.dot(x2d.astype(jnp.bfloat16),
                       w[:OUT_DIM].T.astype(jnp.bfloat16),
                       preferred_element_type=jnp.float32)
               + b[:OUT_DIM]).reshape(B, T, OUT_DIM)
    assert out_det.shape == (B, T, OUT_DIM)
    assert jnp.allclose(out_det, mu_bf16, atol=3e-2, rtol=3e-2), \
        "linear (mu) path mismatch vs reference (bf16 path)"

    # 3) Default (bf16) stochastic run: shape + finiteness.
    out = parametrized_logistic(x, w, b, knoise)
    jax.block_until_ready(out)
    assert out.shape == (B, T, OUT_DIM)
    assert bool(jnp.all(jnp.isfinite(out)))

    print("KERNEL_OK")
</pallas_src>

<mosaic_0001>
module attributes {stable_mosaic.version = 11 : i64} {
  func.func @_parametrized_logistic_kernel(%arg0: i32, %arg1: memref<8x32xf32, #tpu.memory_space<vmem>>, %arg2: memref<32x32xf32, #tpu.memory_space<vmem>>, %arg3: memref<1x32xf32, #tpu.memory_space<vmem>>, %arg4: memref<8x16xf32, #tpu.memory_space<vmem>>, %arg5: memref<8x16xf32, #tpu.memory_space<vmem>>) attributes {dimension_semantics = [#tpu.dimension_semantics<parallel>], iteration_bounds = array<i64: 2>, scalar_prefetch = 0 : i64, scratch_operands = 0 : i64, tpu.core_type = #tpu.core_type<tc>, window_params = [{transform_indices = @transform_0, window_bounds = array<i64: 8, 32>}, {pipeline_mode = #tpu.pipeline_mode<synchronous>, transform_indices = @transform_1, window_bounds = array<i64: 32, 32>}, {pipeline_mode = #tpu.pipeline_mode<synchronous>, transform_indices = @transform_2, window_bounds = array<i64: 1, 32>}, {transform_indices = @transform_3, window_bounds = array<i64: 8, 16>}, {transform_indices = @transform_4, window_bounds = array<i64: 8, 16>}]} {
    %c0 = arith.constant 0 : index
    %c0_0 = arith.constant 0 : index
    %0 = vector.load %arg1[%c0, %c0_0] : memref<8x32xf32, #tpu.memory_space<vmem>>, vector<8x32xf32>
    %c0_1 = arith.constant 0 : index
    %c0_2 = arith.constant 0 : index
    %1 = vector.load %arg2[%c0_1, %c0_2] : memref<32x32xf32, #tpu.memory_space<vmem>>, vector<32x32xf32>
    %cst = arith.constant dense<0.000000e+00> : vector<8x32xf32>
    %2 = tpu.matmul %0, %1, %cst {dimension_numbers = #tpu.dot_dimension_numbers<[1], [1], [0], [0], [0, 0, 1, 0], [], []>} : vector<8x32xf32>, vector<32x32xf32>, vector<8x32xf32> -> vector<8x32xf32>
    %c0_3 = arith.constant 0 : index
    %c0_4 = arith.constant 0 : index
    %3 = vector.load %arg3[%c0_3, %c0_4] : memref<1x32xf32, #tpu.memory_space<vmem>>, vector<1x32xf32>
    %4 = vector.broadcast %3 : vector<1x32xf32> to vector<8x32xf32>
    %5 = arith.addf %2, %4 : vector<8x32xf32>
    %6 = vector.extract_strided_slice %5 {offsets = [0, 0], sizes = [8, 16], strides = [1, 1]} : vector<8x32xf32> to vector<8x16xf32>
    %7 = vector.extract_strided_slice %5 {offsets = [0, 16], sizes = [8, 16], strides = [1, 1]} : vector<8x32xf32> to vector<8x16xf32>
    %c0_5 = arith.constant 0 : index
    %c0_6 = arith.constant 0 : index
    %8 = vector.load %arg4[%c0_5, %c0_6] : memref<8x16xf32, #tpu.memory_space<vmem>>, vector<8x16xf32>
    %cst_7 = arith.constant 1.17549435E-38 : f32
    %cst_8 = arith.constant 0.99999988 : f32
    %9 = vector.broadcast %cst_7 : f32 to vector<8x16xf32>
    %10 = arith.maximumf %9, %8 : vector<8x16xf32>
    %11 = vector.broadcast %cst_8 : f32 to vector<8x16xf32>
    %12 = arith.minimumf %11, %10 : vector<8x16xf32>
    %13 = math.log %12 : vector<8x16xf32>
    %cst_9 = arith.constant 0.000000e+00 : f32
    %14 = vector.broadcast %cst_9 : f32 to vector<8x16xf32>
    %15 = arith.subf %14, %12 : vector<8x16xf32>
    %16 = math.log1p %15 : vector<8x16xf32>
    %17 = arith.subf %13, %16 : vector<8x16xf32>
    %18 = arith.mulf %17, %7 : vector<8x16xf32>
    %19 = arith.addf %6, %18 : vector<8x16xf32>
    %c0_10 = arith.constant 0 : index
    %c0_11 = arith.constant 0 : index
    %20 = vector.load %arg5[%c0_10, %c0_11] : memref<8x16xf32, #tpu.memory_space<vmem>>, vector<8x16xf32>
    tpu.vector_store %arg5[%c0_10, %c0_11], %19 {strides = array<i32>} : memref<8x16xf32, #tpu.memory_space<vmem>>, vector<8x16xf32>,
    return
  }
  func.func @transform_0(%arg0: i32) -> (i32, i32) {
    %c0_i32 = arith.constant 0 : i32
    %c0_i32_0 = arith.constant 0 : i32
    return %arg0, %c0_i32 : i32, i32
  }
  func.func @transform_1(%arg0: i32) -> (i32, i32) {
    %c0_i32 = arith.constant 0 : i32
    %c0_i32_0 = arith.constant 0 : i32
    %c0_i32_1 = arith.constant 0 : i32
    return %c0_i32, %c0_i32_0 : i32, i32
  }
  func.func @transform_2(%arg0: i32) -> (i32, i32) {
    %c0_i32 = arith.constant 0 : i32
    %c0_i32_0 = arith.constant 0 : i32
    %c0_i32_1 = arith.constant 0 : i32
    return %c0_i32, %c0_i32_0 : i32, i32
  }
  func.func @transform_3(%arg0: i32) -> (i32, i32) {
    %c0_i32 = arith.constant 0 : i32
    %c0_i32_0 = arith.constant 0 : i32
    return %arg0, %c0_i32 : i32, i32
  }
  func.func @transform_4(%arg0: i32) -> (i32, i32) {
    %c0_i32 = arith.constant 0 : i32
    %c0_i32_0 = arith.constant 0 : i32
    return %arg0, %c0_i32 : i32, i32
  }
}

</mosaic_0001>

<llo_original>
// kernel: tpu_custom_call.1
$region0: #{tpu_custom_call.1}
  #allocation0 [shape = 'u32[]', space=smem, size = 0x4, offset = 0x4, fixed_abs, tag = 'smem constant byte address 0x4 - core index']
  #allocation1 [shape = 'u32[144,128]{1,0:T(1,128)}', space=vmem, size = 0x12000, scoped, tag = 'internal scratch']
  %s0 = inlined_call_operand.hbm [shape: f32[16,32], index: 0, kind: input, shape index: {}]
  %s1 = inlined_call_operand.hbm [shape: f32[32,32], index: 1, kind: input, shape index: {}]
  %s2 = inlined_call_operand.vmem [shape: f32[1,32], index: 2, kind: input, shape index: {}]
  %s3 = inlined_call_operand.hbm [shape: f32[16,16], index: 3, kind: input, shape index: {}]
  %s4 = inlined_call_operand.hbm [shape: f32[16,16], index: 4, kind: output, shape index: {}]
  %s5 = sld [smem:[#allocation0]]
  $region61: #{tpu_custom_call.1} parent=0
    _
  %s7 = ssub.s32 1, %s5
  %s8 = scalar_select 0, %s7, %s5
  $region1: #{tpu_custom_call.1} parent=0
    #allocation2 [shape = 'u8[8192]{0}', space=vmem, size = 0x2000, scoped, tag = 'input window, operand 0']
    #allocation3 [shape = 's32[2]{0}', space=sflag, size = 0x8, scoped, tag = 'scoped memory for tpu_custom_call.1']
    #allocation4 [shape = 's32[2]{0}', space=sflag, size = 0x8, scoped, tag = 'scoped memory for tpu_custom_call.1']
    #allocation5 [shape = 'u8[16384]{0}', space=vmem, size = 0x4000, scoped, tag = 'input window, operand 1, single buffered']
    #allocation6 [shape = 's32[1]{0}', space=sflag, size = 0x4, scoped, tag = 'scoped memory for tpu_custom_call.1']
    #allocation7 [shape = 'u8[8192]{0}', space=vmem, size = 0x2000, scoped, tag = 'input window, operand 3']
    #allocation8 [shape = 'u8[8192]{0}', space=vmem, size = 0x2000, scoped, tag = 'output window, operand 0']
    %9 = vsyncpa [#allocation3], 0
    %s10 = scalar_lea.sflag [#allocation3], 1
    %11 = vsyncpa %s10, 0
    %12 = vsyncpa [#allocation6], 0
    %13 = vsyncpa [#allocation4], 0
    %s14 = scalar_lea.sflag [#allocation4], 1
    %15 = vsyncpa %s14, 0
    loop: start=0, step=1, limit=4
    $region2: #{tpu_custom_call.1} parent=1 // loop_pre_header
      _
    $region3: #{tpu_custom_call.1} parent=1 // loop_header
      %s17 = sphi 0, %s21
      %p18 = scmp.ge.s32.totalorder %s17, 4
      %s27 = sphi 0, %s29
      %s30 = sphi 0, %s27
      %s31 = sphi 0, %s30
      %s47 = sphi 0, %s31
      %s51 = sphi 0, %s51
      %s53 = sphi 0, %s51
      %s54 = sphi 0, %s53
      %s68 = sphi 0, %s54
      %s72 = sphi 0, %s72
      %s74 = sphi 0, %s72
      %s75 = sphi 0, %s74
      %s89 = sphi 0, %s75
      %s95 = sphi 0, %s97
      %s98 = sphi 0, %s95
      %s99 = sphi 0, %s98
      %s115 = sphi 0, %s99
      %s121 = sphi 0, %s123
      %s124 = sphi 0, %s121
      %s125 = sphi 0, %s124
      %s141 = sphi 0, %s125
    $region4: #{tpu_custom_call.1} parent=1 // loop_header_branch
      %20 = sbr.rel (%p18) target = $region8
    $region5: #{tpu_custom_call.1} parent=1 // loop_body
      %s22 = ssub.s32 %s17, 1
      %s23 = ssub.s32 %s17, 2
      %s24 = sadd.s32 %s17, 1
      %s25 = ssub.s32 %s17, %s24
      %p26 = scmp.eq.s32.totalorder %s25, 0
      %s28 = sadd.s32 %s27, 1
      %s29 = scalar_select %p26, %s27, %s28
      %p32 = pneg %p26
      %p33 = scmp.eq.s32.totalorder %s17, 1
      %p34 = por %p32, %p33
      %p35 = scmp.ne.s32.totalorder %s27, %s30
      %p36 = scmp.eq.s32.totalorder %s17, 0
      %p37 = por %p35, %p36
      %p38 = scmp.ne.s32.totalorder %s27, %s30
      %p39 = scmp.eq.s32.totalorder %s22, 1
      %p40 = por %p38, %p39
      %p41 = scmp.ne.s32.totalorder %s30, %s31
      %p42 = scmp.eq.s32.totalorder %s22, 0
      %p43 = por %p41, %p42
      %p44 = scmp.ne.s32.totalorder %s30, %s31
      %p45 = scmp.eq.s32.totalorder %s23, 1
      %p46 = por %p44, %p45
      %p48 = scmp.ne.s32.totalorder %s31, %s47
      %p49 = scmp.eq.s32.totalorder %s23, 0
      %p50 = por %p48, %p49
      %s52 = sadd.s32 %s51, 1
      %p55 = scmp.eq.s32.totalorder %s17, 1
      %p56 = scmp.ne.s32.totalorder %s51, %s53
      %p57 = scmp.eq.s32.totalorder %s17, 0
      %p58 = por %p56, %p57
      %p59 = scmp.ne.s32.totalorder %s51, %s53
      %p60 = scmp.eq.s32.totalorder %s22, 1
      %p61 = por %p59, %p60
      %p62 = scmp.ne.s32.totalorder %s53, %s54
      %p63 = scmp.eq.s32.totalorder %s22, 0
      %p64 = por %p62, %p63
      %p65 = scmp.ne.s32.totalorder %s53, %s54
      %p66 = scmp.eq.s32.totalorder %s23, 1
      %p67 = por %p65, %p66
      %p69 = scmp.ne.s32.totalorder %s54, %s68
      %p70 = scmp.eq.s32.totalorder %s23, 0
      %p71 = por %p69, %p70
      %s73 = sadd.s32 %s72, 1
      %p76 = scmp.eq.s32.totalorder %s17, 1
      %p77 = scmp.ne.s32.totalorder %s72, %s74
      %p78 = scmp.eq.s32.totalorder %s17, 0
      %p79 = por %p77, %p78
      %p80 = scmp.ne.s32.totalorder %s72, %s74
      %p81 = scmp.eq.s32.totalorder %s22, 1
      %p82 = por %p80, %p81
      %p83 = scmp.ne.s32.totalorder %s74, %s75
      %p84 = scmp.eq.s32.totalorder %s22, 0
      %p85 = por %p83, %p84
      %p86 = scmp.ne.s32.totalorder %s74, %s75
      %p87 = scmp.eq.s32.totalorder %s23, 1
      %p88 = por %p86, %p87
      %p90 = scmp.ne.s32.totalorder %s75, %s89
      %p91 = scmp.eq.s32.totalorder %s23, 0
      %p92 = por %p90, %p91
      %s93 = ssub.s32 %s17, %s24
      %p94 = scmp.eq.s32.totalorder %s93, 0
      %s96 = sadd.s32 %s95, 1
      %s97 = scalar_select %p94, %s95, %s96
      %p100 = pneg %p94
      %p101 = scmp.eq.s32.totalorder %s17, 1
      %p102 = por %p100, %p101
      %p103 = scmp.ne.s32.totalorder %s95, %s98
      %p104 = scmp.eq.s32.totalorder %s17, 0
      %p105 = por %p103, %p104
      %p106 = scmp.ne.s32.totalorder %s95, %s98
      %p107 = scmp.eq.s32.totalorder %s22, 1
      %p108 = por %p106, %p107
      %p109 = scmp.ne.s32.totalorder %s98, %s99
      %p110 = scmp.eq.s32.totalorder %s22, 0
      %p111 = por %p109, %p110
      %p112 = scmp.ne.s32.totalorder %s98, %s99
      %p113 = scmp.eq.s32.totalorder %s23, 1
      %p114 = por %p112, %p113
      %p116 = scmp.ne.s32.totalorder %s99, %s115
      %p117 = scmp.eq.s32.totalorder %s23, 0
      %p118 = por %p116, %p117
      %s119 = ssub.s32 %s17, %s24
      %p120 = scmp.eq.s32.totalorder %s119, 0
      %s122 = sadd.s32 %s121, 1
      %s123 = scalar_select %p120, %s121, %s122
      %p126 = pneg %p120
      %p127 = scmp.eq.s32.totalorder %s17, 1
      %p128 = por %p126, %p127
      %p129 = scmp.ne.s32.totalorder %s121, %s124
      %p130 = scmp.eq.s32.totalorder %s17, 0
      %p131 = por %p129, %p130
      %p132 = scmp.ne.s32.totalorder %s121, %s124
      %p133 = scmp.eq.s32.totalorder %s22, 1
      %p134 = por %p132, %p133
      %p135 = scmp.ne.s32.totalorder %s124, %s125
      %p136 = scmp.eq.s32.totalorder %s22, 0
      %p137 = por %p135, %p136
      %p138 = scmp.ne.s32.totalorder %s124, %s125
      %p139 = scmp.eq.s32.totalorder %s23, 1
      %p140 = por %p138, %p139
      %p142 = scmp.ne.s32.totalorder %s125, %s141
      %p143 = scmp.eq.s32.totalorder %s23, 0
      %p144 = por %p142, %p143
      %p145 = scmp.le.s32.totalorder 1, %s17
      %p146 = scmp.lt.s32.totalorder %s17, 3
      %p147 = pnand %p145, %p146
      %p148 = pneg %p147
      // Predicated region
      $region9: #{tpu_custom_call.1} parent=5 // pred_check
        _
      $region10: #{tpu_custom_call.1} parent=5 // pred_check_branch
        %150 = sbr.rel (%p147) target = $region12
      $region11: #{tpu_custom_call.1} parent=5 // pred_region
        %s151 = ssub.s32 %s17, 1
        // Predicated region
        $region13: #{tpu_custom_call.1} parent=11 // pred_check
          %p152 = pneg %p64
        $region14: #{tpu_custom_call.1} parent=11 // pred_check_branch
          %154 = sbr.rel (%p152) target = $region16
        $region15: #{tpu_custom_call.1} parent=11 // pred_region
          %s156 = ssub.s32 512, 512
          %157 = vsyncadd [#allocation6], %s156
          %s158 = sshll.u32 [#allocation5], 4
          %s159 = int_to_ptr.vmem [resolvable:$true] %s158
          %164 = dma.hbm_to_vmem [thread:$0]  %s1, 512, %s159, [#allocation6], 128, 128, 8
        $region16: #{tpu_custom_call.1} parent=11 // pred_fallthru
          _
        // Predicated region
        $region17: #{tpu_custom_call.1} parent=11 // pred_check
          %p165 = pneg %p85
        $region18: #{tpu_custom_call.1} parent=11 // pred_check_branch
          %167 = sbr.rel (%p165) target = $region20
        $region19: #{tpu_custom_call.1} parent=11 // pred_region
          _
        $region20: #{tpu_custom_call.1} parent=11 // pred_fallthru
          _
      $region12: #{tpu_custom_call.1} parent=5 // pred_fallthru
        _
      %p168 = scmp.lt.s32.totalorder %s17, 2
      // Predicated region
      $region21: #{tpu_custom_call.1} parent=5 // pred_check
        %p169 = pneg %p168
      $region22: #{tpu_custom_call.1} parent=5 // pred_check_branch
        %171 = sbr.rel (%p169) target = $region24
      $region23: #{tpu_custom_call.1} parent=5 // pred_region
        // Predicated region
        $region25: #{tpu_custom_call.1} parent=23 // pred_check
          %p172 = pneg %p37
        $region26: #{tpu_custom_call.1} parent=23 // pred_check_branch
          %174 = sbr.rel (%p172) target = $region28
        $region27: #{tpu_custom_call.1} parent=23 // pred_region
          %s175 = sand.u32 %s17, 1
          %s176 = scalar_lea.sflag [#allocation3], %s175
          %s177 = sand.u32 %s27, 1
          %s178 = smul.addr %s177, 8
          %s179 = scalar_lea.vmem [#allocation2], %s178
          %s181 = ssub.s32 128, 128
          %182 = vsyncadd %s176, %s181
          %s183 = smul.addr %s17, 128
          %s184 = scalar_lea.hbm %s0, %s183
          %s186 = sshll.u32 %s179, 4
          %s187 = int_to_ptr.vmem [resolvable:$true] %s186
          %189 = dma.hbm_to_vmem [thread:$0]  %s184, 128, %s187, %s176
        $region28: #{tpu_custom_call.1} parent=23 // pred_fallthru
          _
        // Predicated region
        $region29: #{tpu_custom_call.1} parent=23 // pred_check
          %p190 = pneg %p105
        $region30: #{tpu_custom_call.1} parent=23 // pred_check_branch
          %192 = sbr.rel (%p190) target = $region32
        $region31: #{tpu_custom_call.1} parent=23 // pred_region
          %s193 = sand.u32 %s17, 1
          %s194 = scalar_lea.sflag [#allocation3], %s193
          %s195 = sand.u32 %s95, 1
          %s196 = smul.addr %s195, 8
          %s197 = scalar_lea.vmem [#allocation7], %s196
          %s199 = ssub.s32 128, 128
          %200 = vsyncadd %s194, %s199
          %s201 = smul.addr %s17, 128
          %s202 = scalar_lea.hbm %s3, %s201
          %s204 = sshll.u32 %s197, 4
          %s205 = int_to_ptr.vmem [resolvable:$true] %s204
          %207 = dma.hbm_to_vmem [thread:$0]  %s202, 128, %s205, %s194
        $region32: #{tpu_custom_call.1} parent=23 // pred_fallthru
          _
      $region24: #{tpu_custom_call.1} parent=5 // pred_fallthru
        _
      %p208 = scmp.le.s32.totalorder 1, %s17
      %p209 = scmp.lt.s32.totalorder %s17, 3
      %p210 = pnand %p208, %p209
      %p211 = pneg %p210
      // Predicated region
      $region33: #{tpu_custom_call.1} parent=5 // pred_check
        _
      $region34: #{tpu_custom_call.1} parent=5 // pred_check_branch
        %213 = sbr.rel (%p210) target = $region36
      $region35: #{tpu_custom_call.1} parent=5 // pred_region
        %s214 = ssub.s32 %s17, 1
        %s215 = sand.u32 %s22, 1
        %s216 = scalar_lea.sflag [#allocation3], %s215
        %s217 = sand.u32 %s30, 1
        %s218 = smul.addr %s217, 8
        %s219 = scalar_lea.vmem [#allocation2], %s218
        // Predicated region
        $region37: #{tpu_custom_call.1} parent=35 // pred_check
          %p220 = pneg %p43
        $region38: #{tpu_custom_call.1} parent=35 // pred_check_branch
          %222 = sbr.rel (%p220) target = $region40
        $region39: #{tpu_custom_call.1} parent=35 // pred_region
          %223 = dma.done %s216, 128
        $region40: #{tpu_custom_call.1} parent=35 // pred_fallthru
          _
        // Predicated region
        $region41: #{tpu_custom_call.1} parent=35 // pred_check
          %p224 = pneg %p64
        $region42: #{tpu_custom_call.1} parent=35 // pred_check_branch
          %226 = sbr.rel (%p224) target = $region44
        $region43: #{tpu_custom_call.1} parent=35 // pred_region
          %227 = dma.done [#allocation6], 512
        $region44: #{tpu_custom_call.1} parent=35 // pred_fallthru
          _
        %s228 = sand.u32 %s22, 1
        %s229 = scalar_lea.sflag [#allocation3], %s228
        %s230 = sand.u32 %s98, 1
        %s231 = smul.addr %s230, 8
        %s232 = scalar_lea.vmem [#allocation7], %s231
        // Predicated region
        $region45: #{tpu_custom_call.1} parent=35 // pred_check
          %p233 = pneg %p111
        $region46: #{tpu_custom_call.1} parent=35 // pred_check_branch
          %235 = sbr.rel (%p233) target = $region48
        $region47: #{tpu_custom_call.1} parent=35 // pred_region
          %236 = dma.done %s229, 128
        $region48: #{tpu_custom_call.1} parent=35 // pred_fallthru
          _
        %s237 = sand.u32 %s22, 1
        %s238 = scalar_lea.sflag [#allocation3], %s237
        %s239 = sand.u32 %s30, 1
        %s240 = smul.addr %s239, 8
        %s241 = scalar_lea.vmem [#allocation2], %s240
        %p242 = pneg %p43
        %p243 = pneg %p40
        %p244 = pneg %p64
        %p245 = pneg %p61
        %p246 = pneg %p85
        %p247 = pneg %p82
        %s248 = sand.u32 %s22, 1
        %s249 = scalar_lea.sflag [#allocation3], %s248
        %s250 = sand.u32 %s98, 1
        %s251 = smul.addr %s250, 8
        %s252 = scalar_lea.vmem [#allocation7], %s251
        %p253 = pneg %p111
        %p254 = pneg %p108
        %p255 = pneg %p137
        %p256 = pneg %p134
        %s257 = sand.u32 %s124, 1
        %s258 = scalar_lea.sflag [#allocation4], %s257
        %s259 = sand.u32 %s124, 1
        %s260 = smul.addr %s259, 8
        %s261 = scalar_lea.vmem [#allocation8], %s260
        %v262 = vld [vmem:[%s219] sm:$0xff]
        %v263 = vld [vmem:[#allocation5] sm:$0xff]
        %v264 = vld [vmem:[#allocation5 + $0x8] sm:$0xff]
        %v265 = vld [vmem:[#allocation5 + $0x10] sm:$0xff]
        %v266 = vld [vmem:[#allocation5 + $0x18] sm:$0xff]
        %v267 = vld [vmem:[%s2] sm:$0x1]
        %v269 = vlaneseq
        %v270 = vshrl.u32 %v269, 7
        %v271 = vsub.s32 0, %v270
        %v272 = vrot.slane %v267, %v271
        %vm274 = vcmask 261120
        %v276 = vsel %vm274, %v262, 0
        %v279 = vsel %vm274, %v263, 0
        %v282 = vsel %vm274, %v264, 0
        %v285 = vsel %vm274, %v265, 0
        %v288 = vsel %vm274, %v266, 0
        %290 = vmatprep.subr.mxu0 0.0
        %291 = vmatpush1.xpose.msra.mxu0 0.0
        %292 = vmatprep.subr.mxu0 0.0
        %293 = vmatpush1.xpose.msra.mxu0 0.0
        %294 = vmatprep.subr.mxu0 0.0
        %295 = vmatpush1.xpose.msra.mxu0 0.0
        %296 = vmatprep.subr.mxu0 0.0
        %297 = vmatpush1.xpose.msra.mxu0 0.0
        %298 = vmatprep.subr.mxu0 0.0
        %299 = vmatpush1.xpose.msra.mxu0 0.0
        %300 = vmatprep.subr.mxu0 0.0
        %301 = vmatpush1.xpose.msra.mxu0 0.0
        %302 = vmatprep.subr.mxu0 0.0
        %303 = vmatpush1.xpose.msra.mxu0 0.0
        %304 = vmatprep.subr.mxu0 0.0
        %305 = vmatpush1.xpose.msra.mxu0 0.0
        %306 = vmatprep.subr.mxu0 0.0
        %307 = vmatpush1.xpose.msra.mxu0 0.0
        %308 = vmatprep.subr.mxu0 0.0
        %309 = vmatpush1.xpose.msra.mxu0 0.0
        %310 = vmatprep.subr.mxu0 0.0
        %311 = vmatpush1.xpose.msra.mxu0 0.0
        %312 = vmatprep.subr.mxu0 0.0
        %313 = vmatpush1.xpose.msra.mxu0 0.0
        %314 = vmatprep.subr.mxu0 0.0
        %315 = vmatpush1.xpose.msra.mxu0 %v288
        %316 = vmatprep.subr.mxu0 0.0
        %317 = vmatpush1.xpose.msra.mxu0 %v285
        %318 = vmatprep.subr.mxu0 0.0
        %319 = vmatpush1.xpose.msra.mxu0 %v282
        %320 = vmatprep.subr.mxu0 0.0
        %321 = vmatpush1.xpose.msra.mxu0 %v279
        %322 = vmatprep.subr.mxu0 0.0
        %323 = vmatpush2.xpose.msra.mxu0 0.0
        %324 = vmatprep.subr.mxu0 0.0
        %325 = vmatpush2.xpose.msra.mxu0 0.0
        %326 = vmatprep.subr.mxu0 0.0
        %327 = vmatpush2.xpose.msra.mxu0 0.0
        %328 = vmatprep.subr.mxu0 0.0
        %329 = vmatpush2.xpose.msra.mxu0 0.0
        %330 = vmatprep.subr.mxu0 0.0
        %331 = vmatpush2.xpose.msra.mxu0 0.0
        %332 = vmatprep.subr.mxu0 0.0
        %333 = vmatpush2.xpose.msra.mxu0 0.0
        %334 = vmatprep.subr.mxu0 0.0
        %335 = vmatpush2.xpose.msra.mxu0 0.0
        %336 = vmatprep.subr.mxu0 0.0
        %337 = vmatpush2.xpose.msra.mxu0 0.0
        %338 = vmatprep.subr.mxu0 0.0
        %339 = vmatpush2.xpose.msra.mxu0 0.0
        %340 = vmatprep.subr.mxu0 0.0
        %341 = vmatpush2.xpose.msra.mxu0 0.0
        %342 = vmatprep.subr.mxu0 0.0
        %343 = vmatpush2.xpose.msra.mxu0 0.0
        %344 = vmatprep.subr.mxu0 0.0
        %345 = vmatpush2.xpose.msra.mxu0 0.0
        %346 = vmatprep.subr.mxu0 0.0
        %347 = vmatpush2.xpose.msra.mxu0 0.0
        %348 = vmatprep.subr.mxu0 0.0
        %349 = vmatpush2.xpose.msra.mxu0 0.0
        %350 = vmatprep.subr.mxu0 0.0
        %351 = vmatpush2.xpose.msra.mxu0 0.0
        %352 = vmatprep.subr.mxu0 0.0
        %353 = vmatpush2.xpose.msra.mxu0 0.0
        %354 = vmatprep.mubr.f32.mxu0 0.0
        %355 = vmatmul.mubr.f32.gmra.mxu0 %v276
        %v356 = vpop.f32.mrf.mxu0
        %v357 = vadd.f32 %v272, %v356
        %v358 = vpop.f32.mrf.mxu0
        %359 = vdwg.mxu0
        %v360 = vld [vmem:[%s232] sm:$0xff]
        %v361 = vmax.f32 %v360, 1.1754944e-38
        %v362 = vmin.f32 %v361, 0.9999999
        %v363 = vlog2.pop %v362
        %v364 = vmul.f32 %v363, 0.6931472
        %v365 = vsub.f32 0.0, %v362
        %v366 = vadd.f32 %v365, 1.0
        %v367 = vlog2.pop %v366
        %v368 = vmul.f32 %v367, 0.6931472
        %v369 = vmul.f32 -0.5, %v365
        %v370 = vadd.f32 %v369, 1.0
        %v371 = vmul.f32 %v370, %v365
        %v372 = vand.u32 2147483647, %v365
        %vm373 = vcmp.lt.f32.partialorder %v372, 0.0004427343
        %v374 = vsel %vm373, %v371, %v368
        %v375 = vsub.f32 %v364, %v374
        %377 = vrot.lane.b32.xlu0 %v357, 112
        %v378 = vpop.permute.xlu0 %377
        %v380 = vmul.f32 %v375, %v378
        %v381 = vadd.f32 %v357, %v380
        %vm382 = vcmask 130048
        %383 = vst.msk [vmem:[%s261] sm:$0xff] %vm382, %v381
        %s384 = sand.u32 %s124, 1
        %s385 = scalar_lea.sflag [#allocation4], %s384
        %s386 = sand.u32 %s124, 1
        %s387 = smul.addr %s386, 8
        %s388 = scalar_lea.vmem [#allocation8], %s387
        // Predicated region
        $region49: #{tpu_custom_call.1} parent=35 // pred_check
          %p389 = pneg %p134
        $region50: #{tpu_custom_call.1} parent=35 // pred_check_branch
          %391 = sbr.rel (%p389) target = $region52
        $region51: #{tpu_custom_call.1} parent=35 // pred_region
          %s393 = ssub.s32 128, 128
          %394 = vsyncadd %s385, %s393
          %s395 = smul.addr %s22, 128
          %s396 = scalar_lea.hbm %s4, %s395
          %s398 = sshll.u32 %s388, 4
          %s399 = int_to_ptr.vmem [resolvable:$true] %s398
          %401 = dma.vmem_to_hbm [thread:$0]  %s399, 128, %s396, %s385
        $region52: #{tpu_custom_call.1} parent=35 // pred_fallthru
          _
      $region36: #{tpu_custom_call.1} parent=5 // pred_fallthru
        _
      %p402 = scmp.le.s32.totalorder 2, %s17
      // Predicated region
      $region53: #{tpu_custom_call.1} parent=5 // pred_check
        %p403 = pneg %p402
      $region54: #{tpu_custom_call.1} parent=5 // pred_check_branch
        %405 = sbr.rel (%p403) target = $region56
      $region55: #{tpu_custom_call.1} parent=5 // pred_region
        %s406 = ssub.s32 %s17, 2
        // Predicated region
        $region57: #{tpu_custom_call.1} parent=55 // pred_check
          %p407 = pneg %p140
        $region58: #{tpu_custom_call.1} parent=55 // pred_check_branch
          %409 = sbr.rel (%p407) target = $region60
        $region59: #{tpu_custom_call.1} parent=55 // pred_region
          %s410 = sand.u32 %s125, 1
          %s411 = scalar_lea.sflag [#allocation4], %s410
          %s412 = sand.u32 %s125, 1
          %s413 = smul.addr %s412, 8
          %s414 = scalar_lea.vmem [#allocation8], %s413
          %415 = dma.done %s411, 128
        $region60: #{tpu_custom_call.1} parent=55 // pred_fallthru
          _
      $region56: #{tpu_custom_call.1} parent=5 // pred_fallthru
        _
    $region6: #{tpu_custom_call.1} parent=1 // loop_footer
      %s21 = sadd.s32 1, %s17
    $region7: #{tpu_custom_call.1} parent=1 // loop_footer_branch
      %16 = sbr.rel target = $region3
    $region8: #{tpu_custom_call.1} parent=1 // loop_exit
      _
    %416 = vsyncpa [#allocation3], 1
    %s417 = scalar_lea.sflag [#allocation3], 1
    %418 = vsyncpa %s417, 1
    %419 = vsyncpa [#allocation6], 1
    %420 = vsyncpa [#allocation4], 1
    %s421 = scalar_lea.sflag [#allocation4], 1
    %422 = vsyncpa %s421, 1

</llo_original>
